<compile_context>
chip_gen: v7x
topology: tpu7x:2x2x1
jax: 0.10.0
libtpu: 0.0.40
codegen_flags: <defaults>
</compile_context>

<pallas_src>
import functools

import jax
import jax.numpy as jnp
from jax.experimental import pallas as pl
from jax.experimental.pallas import tpu as pltpu

WDP = 128        # padded fused hidden width (hz + hu + input_dim -> 128)
HEAD_PAD = 8     # head output rows padded to one full sublane tile


def _round_up(n, m):
    return ((n + m - 1) // m) * m


# ----------------------------- kernel body ---------------------------------
def picnn_kernel(
    xT_ref,     # (total, TB)        bf16   x^T, batch on lanes
    wfT_ref,    # (WDP, total)       bf16   fused first layer, transposed
    bfT_ref,    # (WDP, 1)           f32
    wlT_ref,    # (L, WDP, WDP)      bf16   fused hidden layers, transposed
    blT_ref,    # (L, WDP, 1)        f32
    whT_ref,    # (HEAD_PAD, WDP)    bf16   fused head (row 0 real, rest 0)
    bh_ref,     # (1, 1)             f32
    out_ref,    # (HEAD_PAD, TB)     f32    row 0 = result
    *,
    hidden_z, hidden_u, input_dim, num_layer,
):
    dot = functools.partial(jnp.dot, preferred_element_type=jnp.float32)
    wd = hidden_z + hidden_u + input_dim
    tb = out_ref.shape[1]

    # ReLU floor per h-row: 0 on the [z | u] rows and the zero-pad rows,
    # -inf on the y pass-through rows so the identity carry stays exact.
    # Hoisted + broadcast once per tile (JAX does not CSE broadcast_in_dim).
    row = jax.lax.broadcasted_iota(jnp.int32, (WDP, 1), 0)
    is_y = jnp.logical_and(row >= hidden_z + hidden_u, row < wd)
    floor = jnp.where(is_y, -jnp.inf, 0.0).astype(jnp.float32)
    floor_b = jnp.broadcast_to(floor, (WDP, tb))

    # first layer: one MXU pass producing h^T = [z | u | y | 0]^T
    h = jnp.maximum(dot(wfT_ref[...], xT_ref[...]) + bfT_ref[...], floor_b)

    # hidden stack: one MXU pass per layer (statically unrolled, L is tiny)
    # TODO(synk): if num_layer grows large, stream layer weights via a grid
    # axis instead of static unroll.
    for i in range(num_layer - 1):
        h = jnp.maximum(
            dot(wlT_ref[i], h.astype(jnp.bfloat16)) + blT_ref[i], floor_b)

    # fused affine head (row 0 carries the real weights) -> (HEAD_PAD, TB)
    out_ref[...] = (
        dot(whT_ref[...], h.astype(jnp.bfloat16)) + bh_ref[...]
    ).astype(out_ref.dtype)


# ------------------------- wrapper-side weight fusion ------------------------
def fuse_params(p, *, input_dim, num_distribution, hidden_u, hidden_z):
    """Fuse per-layer weights into zero-padded block weights acting on the
    concatenated state h = [z | u | y | pad] (width WDP), stored transposed
    (feature-major) and cast to bf16 for the MXU; biases stay f32."""
    f32 = jnp.float32
    bf16 = jnp.bfloat16
    hz, hu = hidden_z, hidden_u
    total = input_dim + num_distribution
    wd = hz + hu + input_dim
    assert wd <= WDP, "increase WDP for these layer sizes"
    L = p["wz"].shape[0]
    eye_y = jnp.eye(input_dim, dtype=f32)

    # first layer: x = [y | u_in] (total) -> h = [z | u | y | 0] (WDP)
    wf = jnp.zeros((total, WDP), f32)
    wf = wf.at[:input_dim, :hz].set(p["wy1"])
    wf = wf.at[input_dim:, :hz].set(p["wu1"])
    wf = wf.at[input_dim:, hz:hz + hu].set(p["wt1"])
    wf = wf.at[:input_dim, hz + hu:wd].set(eye_y)          # y pass-through
    bf = jnp.zeros((1, WDP), f32)
    bf = bf.at[:, :hz].set(p["by1"])
    bf = bf.at[:, hz:hz + hu].set(p["bt1"])

    # hidden layers: h -> h'
    wl = jnp.zeros((L, WDP, WDP), f32)
    wl = wl.at[:, :hz, :hz].set(p["wz"])                   # z -> z'
    wl = wl.at[:, hz:hz + hu, :hz].set(p["wu"])            # u -> z'
    wl = wl.at[:, hz + hu:wd, :hz].set(p["wy"])            # y -> z'
    wl = wl.at[:, hz:hz + hu, hz:hz + hu].set(p["wt"])     # u -> u'
    wl = wl.at[:, hz + hu:wd, hz + hu:wd].set(
        jnp.broadcast_to(eye_y, (L, input_dim, input_dim)))  # y pass-through
    bl = jnp.zeros((L, 1, WDP), f32)
    bl = bl.at[:, :, :hz].set(p["by"])
    bl = bl.at[:, :, hz:hz + hu].set(p["bt"])

    # head: h -> scalar, packed into row 0 of an 8-row padded block
    wh = jnp.zeros((WDP, HEAD_PAD), f32)
    wh = wh.at[:hz, 0:1].set(p["wzf"])
    wh = wh.at[hz:hz + hu, 0:1].set(p["wuf"])
    wh = wh.at[hz + hu:wd, 0:1].set(p["wyf"])
    bh = p["byf"]                                          # (1, 1)

    # feature-major (transposed), bf16 matmul operands, f32 biases
    wfT = wf.T.astype(bf16)                                # (WDP, total)
    bfT = bf.T                                             # (WDP, 1)
    wlT = jnp.transpose(wl, (0, 2, 1)).astype(bf16)        # (L, WDP, WDP)
    blT = jnp.transpose(bl, (0, 2, 1))                     # (L, WDP, 1)
    whT = wh.T.astype(bf16)                                # (HEAD_PAD, WDP)
    return wfT, bfT, wlT, blT, whT, bh


# ------------------------------ pallas wrapper -------------------------------
def picnn_forward(x, params, *, input_dim, num_distribution, hidden_u,
                  hidden_z, num_layer, max_batch_tile=2048):
    B, total = x.shape
    assert total == input_dim + num_distribution

    wfT, bfT, wlT, blT, whT, bh = fuse_params(
        params, input_dim=input_dim, num_distribution=num_distribution,
        hidden_u=hidden_u, hidden_z=hidden_z)

    # Batch sits on the 128-lane axis -> tiles are multiples of 128 lanes.
    # Large tiles amortize the per-grid-step overhead; weights stay resident.
    TB = min(max_batch_tile, _round_up(B, 128))
    Bp = pl.cdiv(B, TB) * TB
    if Bp != B:
        x = jnp.pad(x, ((0, Bp - B), (0, 0)))
    xT = x.T.astype(jnp.bfloat16)                          # (total, Bp)

    kernel = functools.partial(
        picnn_kernel, hidden_z=hidden_z, hidden_u=hidden_u,
        input_dim=input_dim, num_layer=num_layer)

    L = num_layer - 1
    flops = 2 * Bp * (total * WDP + L * WDP * WDP + WDP * HEAD_PAD)
    bytes_accessed = sum(
        int(a.size) * a.dtype.itemsize
        for a in (xT, wfT, bfT, wlT, blT, whT, bh)) + HEAD_PAD * Bp * 4
    cost = pl.CostEstimate(flops=int(flops), transcendentals=0,
                           bytes_accessed=int(bytes_accessed))

    resident2 = lambda i: (0, 0)
    resident3 = lambda i: (0, 0, 0)

    # TODO(synk): on v7x, switch the batch axis to pltpu.CORE_PARALLEL (and
    # force Bp//TB >= 2) so grid steps shard across both TensorCores.
    out = pl.pallas_call(
        kernel,
        out_shape=jax.ShapeDtypeStruct((HEAD_PAD, Bp), jnp.float32),
        grid=(Bp // TB,),
        in_specs=[
            pl.BlockSpec((total, TB), lambda i: (0, i)),   # x^T tiled on batch
            pl.BlockSpec(wfT.shape, resident2),            # weights: resident
            pl.BlockSpec(bfT.shape, resident2),
            pl.BlockSpec(wlT.shape, resident3),
            pl.BlockSpec(blT.shape, resident3),
            pl.BlockSpec(whT.shape, resident2),
            pl.BlockSpec(bh.shape, resident2),
        ],
        out_specs=pl.BlockSpec((HEAD_PAD, TB), lambda i: (0, i)),
        compiler_params=pltpu.CompilerParams(
            dimension_semantics=("parallel",)),
        cost_estimate=cost,
    )(xT, wfT, bfT, wlT, blT, whT, bh)
    return out[0, :B].reshape(B, 1)


# --------------------------- parameter setup --------------------------------
def init_params(key, *, input_dim, num_distribution, hidden_u, hidden_z,
                num_layer):
    """Deterministic synthetic parameters. Linear weights stored as (in, out)
    (i.e. PyTorch weight.T)."""
    L = num_layer - 1
    keys = jax.random.split(key, 16)

    def w(k, shape, scale=0.2):
        return (scale * jax.random.normal(k, shape)).astype(jnp.float32)

    return dict(
        wy1=w(keys[0], (input_dim, hidden_z)),
        by1=w(keys[1], (1, hidden_z)),
        wu1=w(keys[2], (num_distribution, hidden_z)),
        wt1=w(keys[3], (num_distribution, hidden_u)),
        bt1=w(keys[4], (1, hidden_u)),
        wz=w(keys[5], (L, hidden_z, hidden_z)),
        wy=w(keys[6], (L, input_dim, hidden_z)),
        by=w(keys[7], (L, 1, hidden_z)),
        wu=w(keys[8], (L, hidden_u, hidden_z)),
        wt=w(keys[9], (L, hidden_u, hidden_u)),
        bt=w(keys[10], (L, 1, hidden_u)),
        wzf=w(keys[11], (hidden_z, 1)),
        wyf=w(keys[12], (input_dim, 1)),
        byf=w(keys[13], (1, 1)),
        wuf=w(keys[14], (hidden_u, 1)),
    )


# ------------------------- pure-JAX reference --------------------------------
def picnn_reference(x, p, *, input_dim, num_distribution, num_layer):
    relu = lambda v: jnp.maximum(v, 0.0)
    y = x[:, :input_dim]
    u_in = x[:, x.shape[1] - num_distribution:]
    z = relu(y @ p["wy1"] + p["by1"] + u_in @ p["wu1"])
    u = relu(u_in @ p["wt1"] + p["bt1"])
    for i in range(num_layer - 1):
        z = relu(z @ p["wz"][i] + y @ p["wy"][i] + p["by"][i] + u @ p["wu"][i])
        u = relu(u @ p["wt"][i] + p["bt"][i])
    return z @ p["wzf"] + y @ p["wyf"] + p["byf"] + u @ p["wuf"]


# ---------------------------------- main -------------------------------------
if __name__ == "__main__":
    input_dim = 16
    num_distribution = 4
    hidden_u = 32
    hidden_z = 32
    num_layer = 3          # -> 2 hidden-stack iterations
    batch = 8

    key = jax.random.PRNGKey(0)
    k_x, k_p = jax.random.split(key)

    x = jax.random.normal(
        k_x, (batch, input_dim + num_distribution), dtype=jnp.float32)
    params = init_params(
        k_p, input_dim=input_dim, num_distribution=num_distribution,
        hidden_u=hidden_u, hidden_z=hidden_z, num_layer=num_layer)

    out = picnn_forward(
        x, params, input_dim=input_dim, num_distribution=num_distribution,
        hidden_u=hidden_u, hidden_z=hidden_z, num_layer=num_layer)
    out = jax.block_until_ready(out)

    ref = picnn_reference(
        x, params, input_dim=input_dim, num_distribution=num_distribution,
        num_layer=num_layer)

    assert out.shape == (batch, 1)
    # bf16 MXU operands with f32 accumulation -> loosened tolerance.
    assert jnp.allclose(out, ref, atol=5e-2, rtol=5e-2), "mismatch vs reference"

    print("KERNEL_OK")
</pallas_src>

<mosaic_0001>
module attributes {stable_mosaic.version = 11 : i64} {
  func.func @picnn_kernel(%arg0: i32, %arg1: memref<20x128xbf16, #tpu.memory_space<vmem>>, %arg2: memref<128x20xbf16, #tpu.memory_space<vmem>>, %arg3: memref<128x1xf32, #tpu.memory_space<vmem>>, %arg4: memref<2x128x128xbf16, #tpu.memory_space<vmem>>, %arg5: memref<2x128x1xf32, #tpu.memory_space<vmem>>, %arg6: memref<8x128xbf16, #tpu.memory_space<vmem>>, %arg7: memref<1x1xf32, #tpu.memory_space<vmem>>, %arg8: memref<8x128xf32, #tpu.memory_space<vmem>>) attributes {dimension_semantics = [#tpu.dimension_semantics<parallel>], iteration_bounds = array<i64: 1>, scalar_prefetch = 0 : i64, scratch_operands = 0 : i64, tpu.core_type = #tpu.core_type<tc>, window_params = [{transform_indices = @transform_0, window_bounds = array<i64: 20, 128>}, {pipeline_mode = #tpu.pipeline_mode<synchronous>, transform_indices = @transform_1, window_bounds = array<i64: 128, 20>}, {pipeline_mode = #tpu.pipeline_mode<synchronous>, transform_indices = @transform_2, window_bounds = array<i64: 128, 1>}, {pipeline_mode = #tpu.pipeline_mode<synchronous>, transform_indices = @transform_3, window_bounds = array<i64: 2, 128, 128>}, {pipeline_mode = #tpu.pipeline_mode<synchronous>, transform_indices = @transform_4, window_bounds = array<i64: 2, 128, 1>}, {pipeline_mode = #tpu.pipeline_mode<synchronous>, transform_indices = @transform_5, window_bounds = array<i64: 8, 128>}, {pipeline_mode = #tpu.pipeline_mode<synchronous>, transform_indices = @transform_6, window_bounds = array<i64: 1, 1>}, {transform_indices = @transform_7, window_bounds = array<i64: 8, 128>}]} {
    %0 = tpu.iota {dimensions = array<i32: 0>} : vector<128x1xi32>
    %c64_i32 = arith.constant 64 : i32
    %1 = vector.broadcast %c64_i32 : i32 to vector<128x1xi32>
    %2 = arith.cmpi sge, %0, %1 : vector<128x1xi32>
    %c80_i32 = arith.constant 80 : i32
    %3 = vector.broadcast %c80_i32 : i32 to vector<128x1xi32>
    %4 = arith.cmpi slt, %0, %3 : vector<128x1xi32>
    %5 = arith.andi %2, %4 : vector<128x1xi1>
    %cst = arith.constant 0xFF800000 : f32
    %cst_0 = arith.constant 0.000000e+00 : f32
    %6 = vector.broadcast %cst : f32 to vector<128x1xf32>
    %7 = vector.broadcast %cst_0 : f32 to vector<128x1xf32>
    %8 = arith.select %5, %6, %7 : vector<128x1xi1>, vector<128x1xf32>
    %9 = vector.shape_cast %8 : vector<128x1xf32> to vector<128x1xf32>
    %10 = vector.broadcast %9 : vector<128x1xf32> to vector<128x128xf32>
    %c0 = arith.constant 0 : index
    %c0_1 = arith.constant 0 : index
    %11 = vector.load %arg2[%c0, %c0_1] : memref<128x20xbf16, #tpu.memory_space<vmem>>, vector<128x20xbf16>
    %c0_2 = arith.constant 0 : index
    %c0_3 = arith.constant 0 : index
    %12 = vector.load %arg1[%c0_2, %c0_3] : memref<20x128xbf16, #tpu.memory_space<vmem>>, vector<20x128xbf16>
    %cst_4 = arith.constant dense<0.000000e+00> : vector<128x128xf32>
    %13 = tpu.matmul %11, %12, %cst_4 {dimension_numbers = #tpu.dot_dimension_numbers<[1], [0], [0], [1], [0, 0, 1, 1], [], []>} : vector<128x20xbf16>, vector<20x128xbf16>, vector<128x128xf32> -> vector<128x128xf32>
    %c0_5 = arith.constant 0 : index
    %c0_6 = arith.constant 0 : index
    %14 = vector.load %arg3[%c0_5, %c0_6] : memref<128x1xf32, #tpu.memory_space<vmem>>, vector<128x1xf32>
    %15 = vector.broadcast %14 : vector<128x1xf32> to vector<128x128xf32>
    %16 = arith.addf %13, %15 : vector<128x128xf32>
    %17 = arith.maximumf %16, %10 : vector<128x128xf32>
    %c0_7 = arith.constant 0 : index
    %c0_8 = arith.constant 0 : index
    %c0_9 = arith.constant 0 : index
    %18 = vector.load %arg4[%c0_7, %c0_8, %c0_9] : memref<2x128x128xbf16, #tpu.memory_space<vmem>>, vector<1x128x128xbf16>
    %19 = vector.shape_cast %18 : vector<1x128x128xbf16> to vector<128x128xbf16>
    %20 = arith.truncf %17 : vector<128x128xf32> to vector<128x128xbf16>
    %cst_10 = arith.constant dense<0.000000e+00> : vector<128x128xf32>
    %21 = tpu.matmul %19, %20, %cst_10 {dimension_numbers = #tpu.dot_dimension_numbers<[1], [0], [0], [1], [0, 0, 1, 1], [], []>} : vector<128x128xbf16>, vector<128x128xbf16>, vector<128x128xf32> -> vector<128x128xf32>
    %c0_11 = arith.constant 0 : index
    %c0_12 = arith.constant 0 : index
    %c0_13 = arith.constant 0 : index
    %22 = vector.load %arg5[%c0_11, %c0_12, %c0_13] : memref<2x128x1xf32, #tpu.memory_space<vmem>>, vector<1x128x1xf32>
    %23 = vector.shape_cast %22 : vector<1x128x1xf32> to vector<128x1xf32>
    %24 = vector.broadcast %23 : vector<128x1xf32> to vector<128x128xf32>
    %25 = arith.addf %21, %24 : vector<128x128xf32>
    %26 = arith.maximumf %25, %10 : vector<128x128xf32>
    %c1 = arith.constant 1 : index
    %c0_14 = arith.constant 0 : index
    %c0_15 = arith.constant 0 : index
    %27 = vector.load %arg4[%c1, %c0_14, %c0_15] : memref<2x128x128xbf16, #tpu.memory_space<vmem>>, vector<1x128x128xbf16>
    %28 = vector.shape_cast %27 : vector<1x128x128xbf16> to vector<128x128xbf16>
    %29 = arith.truncf %26 : vector<128x128xf32> to vector<128x128xbf16>
    %cst_16 = arith.constant dense<0.000000e+00> : vector<128x128xf32>
    %30 = tpu.matmul %28, %29, %cst_16 {dimension_numbers = #tpu.dot_dimension_numbers<[1], [0], [0], [1], [0, 0, 1, 1], [], []>} : vector<128x128xbf16>, vector<128x128xbf16>, vector<128x128xf32> -> vector<128x128xf32>
    %c1_17 = arith.constant 1 : index
    %c0_18 = arith.constant 0 : index
    %c0_19 = arith.constant 0 : index
    %31 = vector.load %arg5[%c1_17, %c0_18, %c0_19] : memref<2x128x1xf32, #tpu.memory_space<vmem>>, vector<1x128x1xf32>
    %32 = vector.shape_cast %31 : vector<1x128x1xf32> to vector<128x1xf32>
    %33 = vector.broadcast %32 : vector<128x1xf32> to vector<128x128xf32>
    %34 = arith.addf %30, %33 : vector<128x128xf32>
    %35 = arith.maximumf %34, %10 : vector<128x128xf32>
    %c0_20 = arith.constant 0 : index
    %c0_21 = arith.constant 0 : index
    %36 = vector.load %arg6[%c0_20, %c0_21] : memref<8x128xbf16, #tpu.memory_space<vmem>>, vector<8x128xbf16>
    %37 = arith.truncf %35 : vector<128x128xf32> to vector<128x128xbf16>
    %cst_22 = arith.constant dense<0.000000e+00> : vector<8x128xf32>
    %38 = tpu.matmul %36, %37, %cst_22 {dimension_numbers = #tpu.dot_dimension_numbers<[1], [0], [0], [1], [0, 0, 1, 1], [], []>} : vector<8x128xbf16>, vector<128x128xbf16>, vector<8x128xf32> -> vector<8x128xf32>
    %c0_23 = arith.constant 0 : index
    %c0_24 = arith.constant 0 : index
    %39 = vector.load %arg7[%c0_23, %c0_24] : memref<1x1xf32, #tpu.memory_space<vmem>>, vector<1x1xf32>
    %40 = vector.broadcast %39 : vector<1x1xf32> to vector<8x128xf32>
    %41 = arith.addf %38, %40 : vector<8x128xf32>
    %c0_25 = arith.constant 0 : index
    %c0_26 = arith.constant 0 : index
    %42 = vector.load %arg8[%c0_25, %c0_26] : memref<8x128xf32, #tpu.memory_space<vmem>>, vector<8x128xf32>
    tpu.vector_store %arg8[%c0_25, %c0_26], %41 {strides = array<i32>} : memref<8x128xf32, #tpu.memory_space<vmem>>, vector<8x128xf32>,
    return
  }
  func.func @transform_0(%arg0: i32) -> (i32, i32) {
    %c0_i32 = arith.constant 0 : i32
    %c0_i32_0 = arith.constant 0 : i32
    return %c0_i32, %arg0 : i32, i32
  }
  func.func @transform_1(%arg0: i32) -> (i32, i32) {
    %c0_i32 = arith.constant 0 : i32
    %c0_i32_0 = arith.constant 0 : i32
    %c0_i32_1 = arith.constant 0 : i32
    return %c0_i32, %c0_i32_0 : i32, i32
  }
  func.func @transform_2(%arg0: i32) -> (i32, i32) {
    %c0_i32 = arith.constant 0 : i32
    %c0_i32_0 = arith.constant 0 : i32
    %c0_i32_1 = arith.constant 0 : i32
    return %c0_i32, %c0_i32_0 : i32, i32
  }
  func.func @transform_3(%arg0: i32) -> (i32, i32, i32) {
    %c0_i32 = arith.constant 0 : i32
    %c0_i32_0 = arith.constant 0 : i32
    %c0_i32_1 = arith.constant 0 : i32
    %c0_i32_2 = arith.constant 0 : i32
    return %c0_i32, %c0_i32_0, %c0_i32_1 : i32, i32, i32
  }
  func.func @transform_4(%arg0: i32) -> (i32, i32, i32) {
    %c0_i32 = arith.constant 0 : i32
    %c0_i32_0 = arith.constant 0 : i32
    %c0_i32_1 = arith.constant 0 : i32
    %c0_i32_2 = arith.constant 0 : i32
    return %c0_i32, %c0_i32_0, %c0_i32_1 : i32, i32, i32
  }
  func.func @transform_5(%arg0: i32) -> (i32, i32) {
    %c0_i32 = arith.constant 0 : i32
    %c0_i32_0 = arith.constant 0 : i32
    %c0_i32_1 = arith.constant 0 : i32
    return %c0_i32, %c0_i32_0 : i32, i32
  }
  func.func @transform_6(%arg0: i32) -> (i32, i32) {
    %c0_i32 = arith.constant 0 : i32
    %c0_i32_0 = arith.constant 0 : i32
    %c0_i32_1 = arith.constant 0 : i32
    return %c0_i32, %c0_i32_0 : i32, i32
  }
  func.func @transform_7(%arg0: i32) -> (i32, i32) {
    %c0_i32 = arith.constant 0 : i32
    %c0_i32_0 = arith.constant 0 : i32
    return %c0_i32, %arg0 : i32, i32
  }
}

</mosaic_0001>

<llo_original>
// kernel: tpu_custom_call.1
$region0: #{tpu_custom_call.1}
  #allocation0 [shape = 'u32[]', space=smem, size = 0x4, offset = 0x4, fixed_abs, tag = 'smem constant byte address 0x4 - core index']
  #allocation1 [shape = 'u32[144,128]{1,0:T(1,128)}', space=vmem, size = 0x12000, scoped, tag = 'internal scratch']
  #allocation2 [shape = 'f32[1,1]{1,0:T(1,128)S(1)}', space=vmem, size = 0x200, scoped, tag = 'scoped memory for tpu_custom_call.1']
  %s0 = inlined_call_operand.vmem [shape: bf16[20,128], index: 0, kind: input, shape index: {}]
  %s1 = inlined_call_operand.vmem [shape: bf16[128,20], index: 1, kind: input, shape index: {}]
  %s2 = inlined_call_operand.vmem [shape: f32[128,1], index: 2, kind: input, shape index: {}]
  %s3 = inlined_call_operand.vmem [shape: bf16[2,128,128], index: 3, kind: input, shape index: {}]
  %s4 = inlined_call_operand.vmem [shape: f32[2,128,1], index: 4, kind: input, shape index: {}]
  %s5 = inlined_call_operand.vmem [shape: bf16[8,128], index: 5, kind: input, shape index: {}]
  %s6 = inlined_call_operand.<no memory space> [shape: f32[1,1], index: 6, kind: input, shape index: {}]
  %s7 = inlined_call_operand.hbm [shape: f32[8,128], index: 7, kind: output, shape index: {}]
  %s8 = sld [smem:[#allocation0]]
  $region38: #{tpu_custom_call.1} parent=0
    _
  %s10 = ssub.s32 1, %s8
  %s11 = scalar_select 0, %s10, %s8
  %v12 = vstv %s6
  %13 = vst [vmem:[#allocation2] sm:$0x1] %v12
  $region1: #{tpu_custom_call.1} parent=0
    #allocation3 [shape = 'u8[4096]{0}', space=vmem, size = 0x1000, scoped, tag = 'output window, operand 0, single buffered']
    #allocation4 [shape = 's32[1]{0}', space=sflag, size = 0x4, scoped, tag = 'scoped memory for tpu_custom_call.1']
    %14 = vsyncpa [#allocation4], 0
    // Predicated region
    $region2: #{tpu_custom_call.1} parent=1 // pred_check
      _
    $region3: #{tpu_custom_call.1} parent=1 // pred_check_branch
      %16 = sbr.rel (0) target = $region5
    $region4: #{tpu_custom_call.1} parent=1 // pred_region
      _
    $region5: #{tpu_custom_call.1} parent=1 // pred_fallthru
      _
    // Predicated region
    $region6: #{tpu_custom_call.1} parent=1 // pred_check
      _
    $region7: #{tpu_custom_call.1} parent=1 // pred_check_branch
      %18 = sbr.rel (0) target = $region9
    $region8: #{tpu_custom_call.1} parent=1 // pred_region
      _
    $region9: #{tpu_custom_call.1} parent=1 // pred_fallthru
      _
    // Predicated region
    $region10: #{tpu_custom_call.1} parent=1 // pred_check
      _
    $region11: #{tpu_custom_call.1} parent=1 // pred_check_branch
      %20 = sbr.rel (0) target = $region13
    $region12: #{tpu_custom_call.1} parent=1 // pred_region
      _
    $region13: #{tpu_custom_call.1} parent=1 // pred_fallthru
      _
    // Predicated region
    $region14: #{tpu_custom_call.1} parent=1 // pred_check
      _
    $region15: #{tpu_custom_call.1} parent=1 // pred_check_branch
      %22 = sbr.rel (0) target = $region17
    $region16: #{tpu_custom_call.1} parent=1 // pred_region
      _
    $region17: #{tpu_custom_call.1} parent=1 // pred_fallthru
      _
    // Predicated region
    $region18: #{tpu_custom_call.1} parent=1 // pred_check
      _
    $region19: #{tpu_custom_call.1} parent=1 // pred_check_branch
      %24 = sbr.rel (0) target = $region21
    $region20: #{tpu_custom_call.1} parent=1 // pred_region
      _
    $region21: #{tpu_custom_call.1} parent=1 // pred_fallthru
      _
    // Predicated region
    $region22: #{tpu_custom_call.1} parent=1 // pred_check
      _
    $region23: #{tpu_custom_call.1} parent=1 // pred_check_branch
      %26 = sbr.rel (0) target = $region25
    $region24: #{tpu_custom_call.1} parent=1 // pred_region
      _
    $region25: #{tpu_custom_call.1} parent=1 // pred_fallthru
      _
    // Predicated region
    $region26: #{tpu_custom_call.1} parent=1 // pred_check
      _
    $region27: #{tpu_custom_call.1} parent=1 // pred_check_branch
      %28 = sbr.rel (0) target = $region29
    $region28: #{tpu_custom_call.1} parent=1 // pred_region
      _
    $region29: #{tpu_custom_call.1} parent=1 // pred_fallthru
      _
    %v30 = vlaneseq
    %v31 = vshrl.u32 %v30, 7
    %v32 = vadd.s32 %v31, 8
    %v33 = vadd.s32 %v31, 16
    %v34 = vadd.s32 %v31, 24
    %v35 = vadd.s32 %v31, 32
    %v36 = vadd.s32 %v31, 40
    %v37 = vadd.s32 %v31, 48
    %v38 = vadd.s32 %v31, 56
    %v39 = vadd.s32 %v31, 64
    %v40 = vadd.s32 %v31, 72
    %v41 = vadd.s32 %v31, 80
    %v42 = vadd.s32 %v31, 88
    %v43 = vadd.s32 %v31, 96
    %v44 = vadd.s32 %v31, 104
    %v45 = vadd.s32 %v31, 112
    %v46 = vadd.s32 %v31, 120
    %vm47 = vcmp.ge.s32.totalorder %v31, 64
    %vm48 = vcmp.ge.s32.totalorder %v32, 64
    %vm49 = vcmp.ge.s32.totalorder %v33, 64
    %vm50 = vcmp.ge.s32.totalorder %v34, 64
    %vm51 = vcmp.ge.s32.totalorder %v35, 64
    %vm52 = vcmp.ge.s32.totalorder %v36, 64
    %vm53 = vcmp.ge.s32.totalorder %v37, 64
    %vm54 = vcmp.ge.s32.totalorder %v38, 64
    %vm55 = vcmp.ge.s32.totalorder %v39, 64
    %vm56 = vcmp.ge.s32.totalorder %v40, 64
    %vm57 = vcmp.ge.s32.totalorder %v41, 64
    %vm58 = vcmp.ge.s32.totalorder %v42, 64
    %vm59 = vcmp.ge.s32.totalorder %v43, 64
    %vm60 = vcmp.ge.s32.totalorder %v44, 64
    %vm61 = vcmp.ge.s32.totalorder %v45, 64
    %vm62 = vcmp.ge.s32.totalorder %v46, 64
    %vm63 = vcmp.lt.s32.totalorder %v31, 80
    %vm64 = vcmp.lt.s32.totalorder %v32, 80
    %vm65 = vcmp.lt.s32.totalorder %v33, 80
    %vm66 = vcmp.lt.s32.totalorder %v34, 80
    %vm67 = vcmp.lt.s32.totalorder %v35, 80
    %vm68 = vcmp.lt.s32.totalorder %v36, 80
    %vm69 = vcmp.lt.s32.totalorder %v37, 80
    %vm70 = vcmp.lt.s32.totalorder %v38, 80
    %vm71 = vcmp.lt.s32.totalorder %v39, 80
    %vm72 = vcmp.lt.s32.totalorder %v40, 80
    %vm73 = vcmp.lt.s32.totalorder %v41, 80
    %vm74 = vcmp.lt.s32.totalorder %v42, 80
    %vm75 = vcmp.lt.s32.totalorder %v43, 80
    %vm76 = vcmp.lt.s32.totalorder %v44, 80
    %vm77 = vcmp.lt.s32.totalorder %v45, 80
    %vm78 = vcmp.lt.s32.totalorder %v46, 80
    %vm79 = vmand %vm47, %vm63
    %vm80 = vmand %vm48, %vm64
    %vm81 = vmand %vm49, %vm65
    %vm82 = vmand %vm50, %vm66
    %vm83 = vmand %vm51, %vm67
    %vm84 = vmand %vm52, %vm68
    %vm85 = vmand %vm53, %vm69
    %vm86 = vmand %vm54, %vm70
    %vm87 = vmand %vm55, %vm71
    %vm88 = vmand %vm56, %vm72
    %vm89 = vmand %vm57, %vm73
    %vm90 = vmand %vm58, %vm74
    %vm91 = vmand %vm59, %vm75
    %vm92 = vmand %vm60, %vm76
    %vm93 = vmand %vm61, %vm77
    %vm94 = vmand %vm62, %vm78
    %v95 = vsel %vm79, -inf, 0.0
    %v96 = vsel %vm80, -inf, 0.0
    %v97 = vsel %vm81, -inf, 0.0
    %v98 = vsel %vm82, -inf, 0.0
    %v99 = vsel %vm83, -inf, 0.0
    %v100 = vsel %vm84, -inf, 0.0
    %v101 = vsel %vm85, -inf, 0.0
    %v102 = vsel %vm86, -inf, 0.0
    %v103 = vsel %vm87, -inf, 0.0
    %v104 = vsel %vm88, -inf, 0.0
    %v105 = vsel %vm89, -inf, 0.0
    %v106 = vsel %vm90, -inf, 0.0
    %v107 = vsel %vm91, -inf, 0.0
    %v108 = vsel %vm92, -inf, 0.0
    %v109 = vsel %vm93, -inf, 0.0
    %v110 = vsel %vm94, -inf, 0.0
    %v111 = vld [vmem:[%s1] sm:$0xf]
    %v112 = vld [vmem:[%s1 + $0x4] sm:$0xf]
    %v113 = vld [vmem:[%s1 + $0x8] sm:$0xf]
    %v114 = vld [vmem:[%s1 + $0xc] sm:$0xf]
    %v115 = vld [vmem:[%s1 + $0x10] sm:$0xf]
    %v116 = vld [vmem:[%s1 + $0x14] sm:$0xf]
    %v117 = vld [vmem:[%s1 + $0x18] sm:$0xf]
    %v118 = vld [vmem:[%s1 + $0x1c] sm:$0xf]
    %v119 = vld [vmem:[%s1 + $0x20] sm:$0xf]
    %v120 = vld [vmem:[%s1 + $0x24] sm:$0xf]
    %v121 = vld [vmem:[%s1 + $0x28] sm:$0xf]
    %v122 = vld [vmem:[%s1 + $0x2c] sm:$0xf]
    %v123 = vld [vmem:[%s1 + $0x30] sm:$0xf]
    %v124 = vld [vmem:[%s1 + $0x34] sm:$0xf]
    %v125 = vld [vmem:[%s1 + $0x38] sm:$0xf]
    %v126 = vld [vmem:[%s1 + $0x3c] sm:$0xf]
    %v127 = vld [vmem:[%s0] sm:$0xf]
    %v128 = vld [vmem:[%s0 + $0x4] sm:$0xf]
    %v129 = vld [vmem:[%s0 + $0x8] sm:$0x3]
    %v130 = vld [vmem:[%s2] sm:$0xff]
    %v131 = vld [vmem:[%s2 + $0x8] sm:$0xff]
    %v132 = vld [vmem:[%s2 + $0x10] sm:$0xff]
    %v133 = vld [vmem:[%s2 + $0x18] sm:$0xff]
    %v134 = vld [vmem:[%s2 + $0x20] sm:$0xff]
    %v135 = vld [vmem:[%s2 + $0x28] sm:$0xff]
    %v136 = vld [vmem:[%s2 + $0x30] sm:$0xff]
    %v137 = vld [vmem:[%s2 + $0x38] sm:$0xff]
    %v138 = vld [vmem:[%s2 + $0x40] sm:$0xff]
    %v139 = vld [vmem:[%s2 + $0x48] sm:$0xff]
    %v140 = vld [vmem:[%s2 + $0x50] sm:$0xff]
    %v141 = vld [vmem:[%s2 + $0x58] sm:$0xff]
    %v142 = vld [vmem:[%s2 + $0x60] sm:$0xff]
    %v143 = vld [vmem:[%s2 + $0x68] sm:$0xff]
    %v144 = vld [vmem:[%s2 + $0x70] sm:$0xff]
    %v145 = vld [vmem:[%s2 + $0x78] sm:$0xff]
    %147 = vset.pattern.permute.xlu0 0
    %148 = vperm.xlu0 %147, %v130
    %v149 = vpop.permute.xlu0 %148
    %152 = vset.pattern.permute.xlu0 0
    %153 = vperm.xlu0 %152, %v131
    %v154 = vpop.permute.xlu0 %153
    %157 = vset.pattern.permute.xlu0 0
    %158 = vperm.xlu0 %157, %v132
    %v159 = vpop.permute.xlu0 %158
    %162 = vset.pattern.permute.xlu0 0
    %163 = vperm.xlu0 %162, %v133
    %v164 = vpop.permute.xlu0 %163
    %167 = vset.pattern.permute.xlu0 0
    %168 = vperm.xlu0 %167, %v134
    %v169 = vpop.permute.xlu0 %168
    %172 = vset.pattern.permute.xlu0 0
    %173 = vperm.xlu0 %172, %v135
    %v174 = vpop.permute.xlu0 %173
    %177 = vset.pattern.permute.xlu0 0
    %178 = vperm.xlu0 %177, %v136
    %v179 = vpop.permute.xlu0 %178
    %182 = vset.pattern.permute.xlu0 0
    %183 = vperm.xlu0 %182, %v137
    %v184 = vpop.permute.xlu0 %183
    %187 = vset.pattern.permute.xlu0 0
    %188 = vperm.xlu0 %187, %v138
    %v189 = vpop.permute.xlu0 %188
    %192 = vset.pattern.permute.xlu0 0
    %193 = vperm.xlu0 %192, %v139
    %v194 = vpop.permute.xlu0 %193
    %197 = vset.pattern.permute.xlu0 0
    %198 = vperm.xlu0 %197, %v140
    %v199 = vpop.permute.xlu0 %198
    %202 = vset.pattern.permute.xlu0 0
    %203 = vperm.xlu0 %202, %v141
    %v204 = vpop.permute.xlu0 %203
    %207 = vset.pattern.permute.xlu0 0
    %208 = vperm.xlu0 %207, %v142
    %v209 = vpop.permute.xlu0 %208
    %212 = vset.pattern.permute.xlu0 0
    %213 = vperm.xlu0 %212, %v143
    %v214 = vpop.permute.xlu0 %213
    %217 = vset.pattern.permute.xlu0 0
    %218 = vperm.xlu0 %217, %v144
    %v219 = vpop.permute.xlu0 %218
    %222 = vset.pattern.permute.xlu0 0
    %223 = vperm.xlu0 %222, %v145
    %v224 = vpop.permute.xlu0 %223
    %v242 = vunpack.c.l.b16 %v111
    %v243 = vunpack.c.l.b16 %v112
    %v244 = vunpack.c.l.b16 %v113
    %v245 = vunpack.c.l.b16 %v114
    %v246 = vunpack.c.l.b16 %v115
    %v247 = vunpack.c.l.b16 %v116
    %v248 = vunpack.c.l.b16 %v117
    %v249 = vunpack.c.l.b16 %v118
    %v250 = vunpack.c.l.b16 %v119
    %v251 = vunpack.c.l.b16 %v120
    %v252 = vunpack.c.l.b16 %v121
    %v253 = vunpack.c.l.b16 %v122
    %v254 = vunpack.c.l.b16 %v123
    %v255 = vunpack.c.l.b16 %v124
    %v256 = vunpack.c.l.b16 %v125
    %v257 = vunpack.c.l.b16 %v126
    %v258 = vpack.c.b16 %v243, %v242
    %v259 = vpack.c.b16 %v245, %v244
    %v260 = vpack.c.b16 %v247, %v246
    %v261 = vpack.c.b16 %v249, %v248
    %v262 = vpack.c.b16 %v251, %v250
    %v263 = vpack.c.b16 %v253, %v252
    %v264 = vpack.c.b16 %v255, %v254
    %v265 = vpack.c.b16 %v257, %v256
    %v269 = vunpack.c.l.b16 %v127
    %v270 = vunpack.c.l.b16 %v128
    %v271 = vunpack.c.l.b16 %v129
    %v272 = vpack.c.b16 %v270, %v269
    %v273 = vpack.c.b16 %v271, %v271
    %vm275 = vcmask 162816
    %v277 = vsel %vm275, %v258, 0
    %v280 = vsel %vm275, %v259, 0
    %v283 = vsel %vm275, %v260, 0
    %v286 = vsel %vm275, %v261, 0
    %v289 = vsel %vm275, %v262, 0
    %v292 = vsel %vm275, %v263, 0
    %v295 = vsel %vm275, %v264, 0
    %v298 = vsel %vm275, %v265, 0
    %vm300 = vcmask 1041408
    %v302 = vsel %vm300, %v273, 0
    %304 = vmatprep.subr.bf16.mxu0 0
    %305 = vmatpush1.bf16.msra.mxu0 %v272
    %306 = vmatprep.subr.bf16.mxu0 0
    %307 = vmatpush1.bf16.msra.mxu0 %v302
    %308 = vmatprep.subr.bf16.mxu0 0
    %309 = vmatpush1.bf16.msra.mxu0 0
    %310 = vmatprep.subr.bf16.mxu0 0
    %311 = vmatpush1.bf16.msra.mxu0 0
    %312 = vmatprep.subr.bf16.mxu0 0
    %313 = vmatpush1.bf16.msra.mxu0 0
    %314 = vmatprep.subr.bf16.mxu0 0
    %315 = vmatpush1.bf16.msra.mxu0 0
    %316 = vmatprep.subr.bf16.mxu0 0
    %317 = vmatpush1.bf16.msra.mxu0 0
    %318 = vmatprep.subr.bf16.mxu0 0
    %319 = vmatpush1.bf16.msra.mxu0 0
    %320 = vmatprep.subr.bf16.mxu0 0
    %321 = vmatpush1.bf16.msra.mxu0 0
    %322 = vmatprep.subr.bf16.mxu0 0
    %323 = vmatpush1.bf16.msra.mxu0 0
    %324 = vmatprep.subr.bf16.mxu0 0
    %325 = vmatpush1.bf16.msra.mxu0 0
    %326 = vmatprep.subr.bf16.mxu0 0
    %327 = vmatpush1.bf16.msra.mxu0 0
    %328 = vmatprep.subr.bf16.mxu0 0
    %329 = vmatpush1.bf16.msra.mxu0 0
    %330 = vmatprep.subr.bf16.mxu0 0
    %331 = vmatpush1.bf16.msra.mxu0 0
    %332 = vmatprep.subr.bf16.mxu0 0
    %333 = vmatpush1.bf16.msra.mxu0 0
    %334 = vmatprep.subr.bf16.mxu0 0
    %335 = vmatpush1.bf16.msra.mxu0 0
    %336 = vmatprep.mubr.bf16.mxu0 0
    %337 = vmatmul.mubr.bf16.gmra.mrb[0].mxu0 %v277
    %v338 = vpop.f32.mrb[0].mxu0
    %v339 = vadd.f32 %v149, %v338
    %v340 = vpop.f32.mrb[0].mxu0
    %v341 = vpop.f32.mrb[0].mxu0
    %v342 = vadd.f32 %v154, %v341
    %v343 = vpop.f32.mrb[0].mxu0
    %344 = vmatprep.mubr.bf16.mxu0 0
    %345 = vmatmul.mubr.bf16.gmra.mrb[0].mxu0 %v280
    %v346 = vpop.f32.mrb[0].mxu0
    %v347 = vadd.f32 %v159, %v346
    %v348 = vpop.f32.mrb[0].mxu0
    %v349 = vpop.f32.mrb[0].mxu0
    %v350 = vadd.f32 %v164, %v349
    %v351 = vpop.f32.mrb[0].mxu0
    %352 = vmatprep.mubr.bf16.mxu0 0
    %353 = vmatmul.mubr.bf16.gmra.mrb[0].mxu0 %v283
    %v354 = vpop.f32.mrb[0].mxu0
    %v355 = vadd.f32 %v169, %v354
    %v356 = vpop.f32.mrb[0].mxu0
    %v357 = vpop.f32.mrb[0].mxu0
    %v358 = vadd.f32 %v174, %v357
    %v359 = vpop.f32.mrb[0].mxu0
    %360 = vmatprep.mubr.bf16.mxu0 0
    %361 = vmatmul.mubr.bf16.gmra.mrb[0].mxu0 %v286
    %v362 = vpop.f32.mrb[0].mxu0
    %v363 = vadd.f32 %v179, %v362
    %v364 = vpop.f32.mrb[0].mxu0
    %v365 = vpop.f32.mrb[0].mxu0
    %v366 = vadd.f32 %v184, %v365
    %v367 = vpop.f32.mrb[0].mxu0
    %368 = vmatprep.mubr.bf16.mxu0 0
    %369 = vmatmul.mubr.bf16.gmra.mrb[0].mxu0 %v289
    %v370 = vpop.f32.mrb[0].mxu0
    %v371 = vadd.f32 %v189, %v370
    %v372 = vpop.f32.mrb[0].mxu0
    %v373 = vpop.f32.mrb[0].mxu0
    %v374 = vadd.f32 %v194, %v373
    %v375 = vpop.f32.mrb[0].mxu0
    %376 = vmatprep.mubr.bf16.mxu0 0
    %377 = vmatmul.mubr.bf16.gmra.mrb[0].mxu0 %v292
    %v378 = vpop.f32.mrb[0].mxu0
    %v379 = vadd.f32 %v199, %v378
    %v380 = vpop.f32.mrb[0].mxu0
    %v381 = vpop.f32.mrb[0].mxu0
    %v382 = vadd.f32 %v204, %v381
    %v383 = vpop.f32.mrb[0].mxu0
    %384 = vmatprep.mubr.bf16.mxu0 0
    %385 = vmatmul.mubr.bf16.gmra.mrb[0].mxu0 %v295
    %v386 = vpop.f32.mrb[0].mxu0
    %v387 = vadd.f32 %v209, %v386
    %v388 = vpop.f32.mrb[0].mxu0
    %v389 = vpop.f32.mrb[0].mxu0
    %v390 = vadd.f32 %v214, %v389
    %v391 = vpop.f32.mrb[0].mxu0
    %392 = vmatprep.mubr.bf16.mxu0 0
    %393 = vmatmul.mubr.bf16.gmra.mrb[0].mxu0 %v298
    %v394 = vpop.f32.mrb[0].mxu0
    %v395 = vadd.f32 %v219, %v394
    %v396 = vpop.f32.mrb[0].mxu0
    %v397 = vpop.f32.mrb[0].mxu0
    %v398 = vadd.f32 %v224, %v397
    %v399 = vpop.f32.mrb[0].mxu0
    %400 = vdwg.mxu0
    %v401 = vmax.f32 %v339, %v95
    %v402 = vmax.f32 %v342, %v96
    %v403 = vmax.f32 %v347, %v97
    %v404 = vmax.f32 %v350, %v98
    %v405 = vmax.f32 %v355, %v99
    %v406 = vmax.f32 %v358, %v100
    %v407 = vmax.f32 %v363, %v101
    %v408 = vmax.f32 %v366, %v102
    %v409 = vmax.f32 %v371, %v103
    %v410 = vmax.f32 %v374, %v104
    %v411 = vmax.f32 %v379, %v105
    %v412 = vmax.f32 %v382, %v106
    %v413 = vmax.f32 %v387, %v107
    %v414 = vmax.f32 %v390, %v108
    %v415 = vmax.f32 %v395, %v109
    %v416 = vmax.f32 %v398, %v110
    %v417 = vld [vmem:[%s3] sm:$0xf]
    %v418 = vld [vmem:[%s3 + $0x4] sm:$0xf]
    %v419 = vld [vmem:[%s3 + $0x8] sm:$0xf]
    %v420 = vld [vmem:[%s3 + $0xc] sm:$0xf]
    %v421 = vld [vmem:[%s3 + $0x10] sm:$0xf]
    %v422 = vld [vmem:[%s3 + $0x14] sm:$0xf]
    %v423 = vld [vmem:[%s3 + $0x18] sm:$0xf]
    %v424 = vld [vmem:[%s3 + $0x1c] sm:$0xf]
    %v425 = vld [vmem:[%s3 + $0x20] sm:$0xf]
    %v426 = vld [vmem:[%s3 + $0x24] sm:$0xf]
    %v427 = vld [vmem:[%s3 + $0x28] sm:$0xf]
    %v428 = vld [vmem:[%s3 + $0x2c] sm:$0xf]
    %v429 = vld [vmem:[%s3 + $0x30] sm:$0xf]
    %v430 = vld [vmem:[%s3 + $0x34] sm:$0xf]
    %v431 = vld [vmem:[%s3 + $0x38] sm:$0xf]
    %v432 = vld [vmem:[%s3 + $0x3c] sm:$0xf]
    %v433 = vpack.c.bf16 %v402, %v401
    %v434 = vpack.c.bf16 %v404, %v403
    %v435 = vpack.c.bf16 %v406, %v405
    %v436 = vpack.c.bf16 %v408, %v407
    %v437 = vpack.c.bf16 %v410, %v409
    %v438 = vpack.c.bf16 %v412, %v411
    %v439 = vpack.c.bf16 %v414, %v413
    %v440 = vpack.c.bf16 %v416, %v415
    %v441 = vld [vmem:[%s4] sm:$0xff]
    %v442 = vld [vmem:[%s4 + $0x8] sm:$0xff]
    %v443 = vld [vmem:[%s4 + $0x10] sm:$0xff]
    %v444 = vld [vmem:[%s4 + $0x18] sm:$0xff]
    %v445 = vld [vmem:[%s4 + $0x20] sm:$0xff]
    %v446 = vld [vmem:[%s4 + $0x28] sm:$0xff]
    %v447 = vld [vmem:[%s4 + $0x30] sm:$0xff]
    %v448 = vld [vmem:[%s4 + $0x38] sm:$0xff]
    %v449 = vld [vmem:[%s4 + $0x40] sm:$0xff]
    %v450 = vld [vmem:[%s4 + $0x48] sm:$0xff]
    %v451 = vld [vmem:[%s4 + $0x50] sm:$0xff]
    %v452 = vld [vmem:[%s4 + $0x58] sm:$0xff]
    %v453 = vld [vmem:[%s4 + $0x60] sm:$0xff]
    %v454 = vld [vmem:[%s4 + $0x68] sm:$0xff]
    %v455 = vld [vmem:[%s4 + $0x70] sm:$0xff]
    %v456 = vld [vmem:[%s4 + $0x78] sm:$0xff]
    %458 = vset.pattern.permute.xlu0 0
    %459 = vperm.xlu0 %458, %v441
    %v460 = vpop.permute.xlu0 %459
    %463 = vset.pattern.permute.xlu0 0
    %464 = vperm.xlu0 %463, %v442
    %v465 = vpop.permute.xlu0 %464
    %468 = vset.pattern.permute.xlu0 0
    %469 = vperm.xlu0 %468, %v443
    %v470 = vpop.permute.xlu0 %469
    %473 = vset.pattern.permute.xlu0 0
    %474 = vperm.xlu0 %473, %v444
    %v475 = vpop.permute.xlu0 %474
    %478 = vset.pattern.permute.xlu0 0
    %479 = vperm.xlu0 %478, %v445
    %v480 = vpop.permute.xlu0 %479
    %483 = vset.pattern.permute.xlu0 0
    %484 = vperm.xlu0 %483, %v446
    %v485 = vpop.permute.xlu0 %484
    %488 = vset.pattern.permute.xlu0 0
    %489 = vperm.xlu0 %488, %v447
    %v490 = vpop.permute.xlu0 %489
    %493 = vset.pattern.permute.xlu0 0
    %494 = vperm.xlu0 %493, %v448
    %v495 = vpop.permute.xlu0 %494
    %498 = vset.pattern.permute.xlu0 0
    %499 = vperm.xlu0 %498, %v449
    %v500 = vpop.permute.xlu0 %499
    %503 = vset.pattern.permute.xlu0 0
    %504 = vperm.xlu0 %503, %v450
    %v505 = vpop.permute.xlu0 %504
    %508 = vset.pattern.permute.xlu0 0
    %509 = vperm.xlu0 %508, %v451
    %v510 = vpop.permute.xlu0 %509
    %513 = vset.pattern.permute.xlu0 0
    %514 = vperm.xlu0 %513, %v452
    %v515 = vpop.permute.xlu0 %514
    %518 = vset.pattern.permute.xlu0 0
    %519 = vperm.xlu0 %518, %v453
    %v520 = vpop.permute.xlu0 %519
    %523 = vset.pattern.permute.xlu0 0
    %524 = vperm.xlu0 %523, %v454
    %v525 = vpop.permute.xlu0 %524
    %528 = vset.pattern.permute.xlu0 0
    %529 = vperm.xlu0 %528, %v455
    %v530 = vpop.permute.xlu0 %529
    %533 = vset.pattern.permute.xlu0 0
    %534 = vperm.xlu0 %533, %v456
    %v535 = vpop.permute.xlu0 %534
    %v553 = vunpack.c.l.b16 %v417
    %v554 = vunpack.c.l.b16 %v418
    %v555 = vunpack.c.l.b16 %v419
    %v556 = vunpack.c.l.b16 %v420
    %v557 = vunpack.c.l.b16 %v421
    %v558 = vunpack.c.l.b16 %v422
    %v559 = vunpack.c.l.b16 %v423
    %v560 = vunpack.c.l.b16 %v424
    %v561 = vunpack.c.l.b16 %v425
    %v562 = vunpack.c.l.b16 %v426
    %v563 = vunpack.c.l.b16 %v427
    %v564 = vunpack.c.l.b16 %v428
    %v565 = vunpack.c.l.b16 %v429
    %v566 = vunpack.c.l.b16 %v430
    %v567 = vunpack.c.l.b16 %v431
    %v568 = vunpack.c.l.b16 %v432
    %v569 = vpack.c.b16 %v554, %v553
    %v570 = vpack.c.b16 %v556, %v555
    %v571 = vpack.c.b16 %v558, %v557
    %v572 = vpack.c.b16 %v560, %v559
    %v573 = vpack.c.b16 %v562, %v561
    %v574 = vpack.c.b16 %v564, %v563
    %v575 = vpack.c.b16 %v566, %v565
    %v576 = vpack.c.b16 %v568, %v567
    %585 = vmatprep.subr.bf16.mxu0 0
    %586 = vmatpush1.bf16.msra.mxu0 %v433
    %587 = vmatprep.subr.bf16.mxu0 0
    %588 = vmatpush1.bf16.msra.mxu0 %v434
    %589 = vmatprep.subr.bf16.mxu0 0
    %590 = vmatpush1.bf16.msra.mxu0 %v435
    %591 = vmatprep.subr.bf16.mxu0 0
    %592 = vmatpush1.bf16.msra.mxu0 %v436
    %593 = vmatprep.subr.bf16.mxu0 0
    %594 = vmatpush1.bf16.msra.mxu0 %v437
    %595 = vmatprep.subr.bf16.mxu0 0
    %596 = vmatpush1.bf16.msra.mxu0 %v438
    %597 = vmatprep.subr.bf16.mxu0 0
    %598 = vmatpush1.bf16.msra.mxu0 %v439
    %599 = vmatprep.subr.bf16.mxu0 0
    %600 = vmatpush1.bf16.msra.mxu0 %v440
    %601 = vmatprep.subr.bf16.mxu0 0
    %602 = vmatpush1.bf16.msra.mxu0 0
    %603 = vmatprep.subr.bf16.mxu0 0
    %604 = vmatpush1.bf16.msra.mxu0 0
    %605 = vmatprep.subr.bf16.mxu0 0
    %606 = vmatpush1.bf16.msra.mxu0 0
    %607 = vmatprep.subr.bf16.mxu0 0
    %608 = vmatpush1.bf16.msra.mxu0 0
    %609 = vmatprep.subr.bf16.mxu0 0
    %610 = vmatpush1.bf16.msra.mxu0 0
    %611 = vmatprep.subr.bf16.mxu0 0
    %612 = vmatpush1.bf16.msra.mxu0 0
    %613 = vmatprep.subr.bf16.mxu0 0
    %614 = vmatpush1.bf16.msra.mxu0 0
    %615 = vmatprep.subr.bf16.mxu0 0
    %616 = vmatpush1.bf16.msra.mxu0 0
    %617 = vmatprep.mubr.bf16.mxu0 0
    %618 = vmatmul.mubr.bf16.gmra.mrb[0].mxu0 %v569
    %v619 = vpop.f32.mrb[0].mxu0
    %v620 = vadd.f32 %v460, %v619
    %v621 = vpop.f32.mrb[0].mxu0
    %v622 = vpop.f32.mrb[0].mxu0
    %v623 = vadd.f32 %v465, %v622
    %v624 = vpop.f32.mrb[0].mxu0
    %625 = vmatprep.mubr.bf16.mxu0 0
    %626 = vmatmul.mubr.bf16.gmra.mrb[0].mxu0 %v570
    %v627 = vpop.f32.mrb[0].mxu0
    %v628 = vadd.f32 %v470, %v627
    %v629 = vpop.f32.mrb[0].mxu0
    %v630 = vpop.f32.mrb[0].mxu0
    %v631 = vadd.f32 %v475, %v630
    %v632 = vpop.f32.mrb[0].mxu0
    %633 = vmatprep.mubr.bf16.mxu0 0
    %634 = vmatmul.mubr.bf16.gmra.mrb[0].mxu0 %v571
    %v635 = vpop.f32.mrb[0].mxu0
    %v636 = vadd.f32 %v480, %v635
    %v637 = vpop.f32.mrb[0].mxu0
    %v638 = vpop.f32.mrb[0].mxu0
    %v639 = vadd.f32 %v485, %v638
    %v640 = vpop.f32.mrb[0].mxu0
    %641 = vmatprep.mubr.bf16.mxu0 0
    %642 = vmatmul.mubr.bf16.gmra.mrb[0].mxu0 %v572
    %v643 = vpop.f32.mrb[0].mxu0
    %v644 = vadd.f32 %v490, %v643
    %v645 = vpop.f32.mrb[0].mxu0
    %v646 = vpop.f32.mrb[0].mxu0
    %v647 = vadd.f32 %v495, %v646
    %v648 = vpop.f32.mrb[0].mxu0
    %649 = vmatprep.mubr.bf16.mxu0 0
    %650 = vmatmul.mubr.bf16.gmra.mrb[0].mxu0 %v573
    %v651 = vpop.f32.mrb[0].mxu0
    %v652 = vadd.f32 %v500, %v651
    %v653 = vpop.f32.mrb[0].mxu0
    %v654 = vpop.f32.mrb[0].mxu0
    %v655 = vadd.f32 %v505, %v654
    %v656 = vpop.f32.mrb[0].mxu0
    %657 = vmatprep.mubr.bf16.mxu0 0
    %658 = vmatmul.mubr.bf16.gmra.mrb[0].mxu0 %v574
    %v659 = vpop.f32.mrb[0].mxu0
    %v660 = vadd.f32 %v510, %v659
    %v661 = vpop.f32.mrb[0].mxu0
    %v662 = vpop.f32.mrb[0].mxu0
    %v663 = vadd.f32 %v515, %v662
    %v664 = vpop.f32.mrb[0].mxu0
    %665 = vmatprep.mubr.bf16.mxu0 0
    %666 = vmatmul.mubr.bf16.gmra.mrb[0].mxu0 %v575
    %v667 = vpop.f32.mrb[0].mxu0
    %v668 = vadd.f32 %v520, %v667
    %v669 = vpop.f32.mrb[0].mxu0
    %v670 = vpop.f32.mrb[0].mxu0
    %v671 = vadd.f32 %v525, %v670
    %v672 = vpop.f32.mrb[0].mxu0
    %673 = vmatprep.mubr.bf16.mxu0 0
    %674 = vmatmul.mubr.bf16.gmra.mrb[0].mxu0 %v576
    %v675 = vpop.f32.mrb[0].mxu0
    %v676 = vadd.f32 %v530, %v675
    %v677 = vpop.f32.mrb[0].mxu0
    %v678 = vpop.f32.mrb[0].mxu0
    %v679 = vadd.f32 %v535, %v678
    %v680 = vpop.f32.mrb[0].mxu0
    %681 = vdwg.mxu0
    %v682 = vmax.f32 %v620, %v95
    %v683 = vmax.f32 %v623, %v96
    %v684 = vmax.f32 %v628, %v97
    %v685 = vmax.f32 %v631, %v98
    %v686 = vmax.f32 %v636, %v99
    %v687 = vmax.f32 %v639, %v100
    %v688 = vmax.f32 %v644, %v101
    %v689 = vmax.f32 %v647, %v102
    %v690 = vmax.f32 %v652, %v103
    %v691 = vmax.f32 %v655, %v104
    %v692 = vmax.f32 %v660, %v105
    %v693 = vmax.f32 %v663, %v106
    %v694 = vmax.f32 %v668, %v107
    %v695 = vmax.f32 %v671, %v108
    %v696 = vmax.f32 %v676, %v109
    %v697 = vmax.f32 %v679, %v110
    %s698 = scalar_lea.vmem %s3, 64
    %v699 = vld [vmem:[%s698] sm:$0xf]
    %v700 = vld [vmem:[%s698 + $0x4] sm:$0xf]
    %v701 = vld [vmem:[%s698 + $0x8] sm:$0xf]
    %v702 = vld [vmem:[%s698 + $0xc] sm:$0xf]
    %v703 = vld [vmem:[%s698 + $0x10] sm:$0xf]
    %v704 = vld [vmem:[%s698 + $0x14] sm:$0xf]
    %v705 = vld [vmem:[%s698 + $0x18] sm:$0xf]
    %v706 = vld [vmem:[%s698 + $0x1c] sm:$0xf]
    %v707 = vld [vmem:[%s698 + $0x20] sm:$0xf]
    %v708 = vld [vmem:[%s698 + $0x24] sm:$0xf]
    %v709 = vld [vmem:[%s698 + $0x28] sm:$0xf]
    %v710 = vld [vmem:[%s698 + $0x2c] sm:$0xf]
    %v711 = vld [vmem:[%s698 + $0x30] sm:$0xf]
    %v712 = vld [vmem:[%s698 + $0x34] sm:$0xf]
    %v713 = vld [vmem:[%s698 + $0x38] sm:$0xf]
    %v714 = vld [vmem:[%s698 + $0x3c] sm:$0xf]
    %v715 = vpack.c.bf16 %v683, %v682
    %v716 = vpack.c.bf16 %v685, %v684
    %v717 = vpack.c.bf16 %v687, %v686
    %v718 = vpack.c.bf16 %v689, %v688
    %v719 = vpack.c.bf16 %v691, %v690
    %v720 = vpack.c.bf16 %v693, %v692
    %v721 = vpack.c.bf16 %v695, %v694
    %v722 = vpack.c.bf16 %v697, %v696
    %s723 = scalar_lea.vmem %s4, 128
    %v724 = vld [vmem:[%s723] sm:$0xff]
    %v725 = vld [vmem:[%s723 + $0x8] sm:$0xff]
    %v726 = vld [vmem:[%s723 + $0x10] sm:$0xff]
    %v727 = vld [vmem:[%s723 + $0x18] sm:$0xff]
    %v728 = vld [vmem:[%s723 + $0x20] sm:$0xff]
    %v729 = vld [vmem:[%s723 + $0x28] sm:$0xff]
    %v730 = vld [vmem:[%s723 + $0x30] sm:$0xff]
    %v731 = vld [vmem:[%s723 + $0x38] sm:$0xff]
    %v732 = vld [vmem:[%s723 + $0x40] sm:$0xff]
    %v733 = vld [vmem:[%s723 + $0x48] sm:$0xff]
    %v734 = vld [vmem:[%s723 + $0x50] sm:$0xff]
    %v735 = vld [vmem:[%s723 + $0x58] sm:$0xff]
    %v736 = vld [vmem:[%s723 + $0x60] sm:$0xff]
    %v737 = vld [vmem:[%s723 + $0x68] sm:$0xff]
    %v738 = vld [vmem:[%s723 + $0x70] sm:$0xff]
    %v739 = vld [vmem:[%s723 + $0x78] sm:$0xff]
    %741 = vset.pattern.permute.xlu0 0
    %742 = vperm.xlu0 %741, %v724
    %v743 = vpop.permute.xlu0 %742
    %746 = vset.pattern.permute.xlu0 0
    %747 = vperm.xlu0 %746, %v725
    %v748 = vpop.permute.xlu0 %747
    %751 = vset.pattern.permute.xlu0 0
    %752 = vperm.xlu0 %751, %v726
    %v753 = vpop.permute.xlu0 %752
    %756 = vset.pattern.permute.xlu0 0
    %757 = vperm.xlu0 %756, %v727
    %v758 = vpop.permute.xlu0 %757
    %761 = vset.pattern.permute.xlu0 0
    %762 = vperm.xlu0 %761, %v728
    %v763 = vpop.permute.xlu0 %762
    %766 = vset.pattern.permute.xlu0 0
    %767 = vperm.xlu0 %766, %v729
    %v768 = vpop.permute.xlu0 %767
    %771 = vset.pattern.permute.xlu0 0
    %772 = vperm.xlu0 %771, %v730
    %v773 = vpop.permute.xlu0 %772
    %776 = vset.pattern.permute.xlu0 0
    %777 = vperm.xlu0 %776, %v731
    %v778 = vpop.permute.xlu0 %777
    %781 = vset.pattern.permute.xlu0 0
    %782 = vperm.xlu0 %781, %v732
    %v783 = vpop.permute.xlu0 %782
    %786 = vset.pattern.permute.xlu0 0
    %787 = vperm.xlu0 %786, %v733
    %v788 = vpop.permute.xlu0 %787
    %791 = vset.pattern.permute.xlu0 0
    %792 = vperm.xlu0 %791, %v734
    %v793 = vpop.permute.xlu0 %792
    %796 = vset.pattern.permute.xlu0 0
    %797 = vperm.xlu0 %796, %v735
    %v798 = vpop.permute.xlu0 %797
    %801 = vset.pattern.permute.xlu0 0
    %802 = vperm.xlu0 %801, %v736
    %v803 = vpop.permute.xlu0 %802
    %806 = vset.pattern.permute.xlu0 0
    %807 = vperm.xlu0 %806, %v737
    %v808 = vpop.permute.xlu0 %807
    %811 = vset.pattern.permute.xlu0 0
    %812 = vperm.xlu0 %811, %v738
    %v813 = vpop.permute.xlu0 %812
    %816 = vset.pattern.permute.xlu0 0
    %817 = vperm.xlu0 %816, %v739
    %v818 = vpop.permute.xlu0 %817
    %v836 = vunpack.c.l.b16 %v699
    %v837 = vunpack.c.l.b16 %v700
    %v838 = vunpack.c.l.b16 %v701
    %v839 = vunpack.c.l.b16 %v702
    %v840 = vunpack.c.l.b16 %v703
    %v841 = vunpack.c.l.b16 %v704
    %v842 = vunpack.c.l.b16 %v705
    %v843 = vunpack.c.l.b16 %v706
    %v844 = vunpack.c.l.b16 %v707
    %v845 = vunpack.c.l.b16 %v708
    %v846 = vunpack.c.l.b16 %v709
    %v847 = vunpack.c.l.b16 %v710
    %v848 = vunpack.c.l.b16 %v711
    %v849 = vunpack.c.l.b16 %v712
    %v850 = vunpack.c.l.b16 %v713
    %v851 = vunpack.c.l.b16 %v714
    %v852 = vpack.c.b16 %v837, %v836
    %v853 = vpack.c.b16 %v839, %v838
    %v854 = vpack.c.b16 %v841, %v840
    %v855 = vpack.c.b16 %v843, %v842
    %v856 = vpack.c.b16 %v845, %v844
    %v857 = vpack.c.b16 %v847, %v846
    %v858 = vpack.c.b16 %v849, %v848
    %v859 = vpack.c.b16 %v851, %v850
    %868 = vmatprep.subr.bf16.mxu0 0
    %869 = vmatpush1.bf16.msra.mxu0 %v715
    %870 = vmatprep.subr.bf16.mxu0 0
    %871 = vmatpush1.bf16.msra.mxu0 %v716
    %872 = vmatprep.subr.bf16.mxu0 0
    %873 = vmatpush1.bf16.msra.mxu0 %v717
    %874 = vmatprep.subr.bf16.mxu0 0
    %875 = vmatpush1.bf16.msra.mxu0 %v718
    %876 = vmatprep.subr.bf16.mxu0 0
    %877 = vmatpush1.bf16.msra.mxu0 %v719
    %878 = vmatprep.subr.bf16.mxu0 0
    %879 = vmatpush1.bf16.msra.mxu0 %v720
    %880 = vmatprep.subr.bf16.mxu0 0
    %881 = vmatpush1.bf16.msra.mxu0 %v721
    %882 = vmatprep.subr.bf16.mxu0 0
    %883 = vmatpush1.bf16.msra.mxu0 %v722
    %884 = vmatprep.subr.bf16.mxu0 0
    %885 = vmatpush1.bf16.msra.mxu0 0
    %886 = vmatprep.subr.bf16.mxu0 0
    %887 = vmatpush1.bf16.msra.mxu0 0
    %888 = vmatprep.subr.bf16.mxu0 0
    %889 = vmatpush1.bf16.msra.mxu0 0
    %890 = vmatprep.subr.bf16.mxu0 0
    %891 = vmatpush1.bf16.msra.mxu0 0
    %892 = vmatprep.subr.bf16.mxu0 0
    %893 = vmatpush1.bf16.msra.mxu0 0
    %894 = vmatprep.subr.bf16.mxu0 0
    %895 = vmatpush1.bf16.msra.mxu0 0
    %896 = vmatprep.subr.bf16.mxu0 0
    %897 = vmatpush1.bf16.msra.mxu0 0
    %898 = vmatprep.subr.bf16.mxu0 0
    %899 = vmatpush1.bf16.msra.mxu0 0
    %900 = vmatprep.mubr.bf16.mxu0 0
    %901 = vmatmul.mubr.bf16.gmra.mrb[0].mxu0 %v852
    %v902 = vpop.f32.mrb[0].mxu0
    %v903 = vadd.f32 %v743, %v902
    %v904 = vpop.f32.mrb[0].mxu0
    %v905 = vpop.f32.mrb[0].mxu0
    %v906 = vadd.f32 %v748, %v905
    %v907 = vpop.f32.mrb[0].mxu0
    %908 = vmatprep.mubr.bf16.mxu0 0
    %909 = vmatmul.mubr.bf16.gmra.mrb[0].mxu0 %v853
    %v910 = vpop.f32.mrb[0].mxu0
    %v911 = vadd.f32 %v753, %v910
    %v912 = vpop.f32.mrb[0].mxu0
    %v913 = vpop.f32.mrb[0].mxu0
    %v914 = vadd.f32 %v758, %v913
    %v915 = vpop.f32.mrb[0].mxu0
    %916 = vmatprep.mubr.bf16.mxu0 0
    %917 = vmatmul.mubr.bf16.gmra.mrb[0].mxu0 %v854
    %v918 = vpop.f32.mrb[0].mxu0
    %v919 = vadd.f32 %v763, %v918
    %v920 = vpop.f32.mrb[0].mxu0
    %v921 = vpop.f32.mrb[0].mxu0
    %v922 = vadd.f32 %v768, %v921
    %v923 = vpop.f32.mrb[0].mxu0
    %924 = vmatprep.mubr.bf16.mxu0 0
    %925 = vmatmul.mubr.bf16.gmra.mrb[0].mxu0 %v855
    %v926 = vpop.f32.mrb[0].mxu0
    %v927 = vadd.f32 %v773, %v926
    %v928 = vpop.f32.mrb[0].mxu0
    %v929 = vpop.f32.mrb[0].mxu0
    %v930 = vadd.f32 %v778, %v929
    %v931 = vpop.f32.mrb[0].mxu0
    %932 = vmatprep.mubr.bf16.mxu0 0
    %933 = vmatmul.mubr.bf16.gmra.mrb[0].mxu0 %v856
    %v934 = vpop.f32.mrb[0].mxu0
    %v935 = vadd.f32 %v783, %v934
    %v936 = vpop.f32.mrb[0].mxu0
    %v937 = vpop.f32.mrb[0].mxu0
    %v938 = vadd.f32 %v788, %v937
    %v939 = vpop.f32.mrb[0].mxu0
    %940 = vmatprep.mubr.bf16.mxu0 0
    %941 = vmatmul.mubr.bf16.gmra.mrb[0].mxu0 %v857
    %v942 = vpop.f32.mrb[0].mxu0
    %v943 = vadd.f32 %v793, %v942
    %v944 = vpop.f32.mrb[0].mxu0
    %v945 = vpop.f32.mrb[0].mxu0
    %v946 = vadd.f32 %v798, %v945
    %v947 = vpop.f32.mrb[0].mxu0
    %948 = vmatprep.mubr.bf16.mxu0 0
    %949 = vmatmul.mubr.bf16.gmra.mrb[0].mxu0 %v858
    %v950 = vpop.f32.mrb[0].mxu0
    %v951 = vadd.f32 %v803, %v950
    %v952 = vpop.f32.mrb[0].mxu0
    %v953 = vpop.f32.mrb[0].mxu0
    %v954 = vadd.f32 %v808, %v953
    %v955 = vpop.f32.mrb[0].mxu0
    %956 = vmatprep.mubr.bf16.mxu0 0
    %957 = vmatmul.mubr.bf16.gmra.mrb[0].mxu0 %v859
    %v958 = vpop.f32.mrb[0].mxu0
    %v959 = vadd.f32 %v813, %v958
    %v960 = vpop.f32.mrb[0].mxu0
    %v961 = vpop.f32.mrb[0].mxu0
    %v962 = vadd.f32 %v818, %v961
    %v963 = vpop.f32.mrb[0].mxu0
    %964 = vdwg.mxu0
    %v965 = vmax.f32 %v903, %v95
    %v966 = vmax.f32 %v906, %v96
    %v967 = vmax.f32 %v911, %v97
    %v968 = vmax.f32 %v914, %v98
    %v969 = vmax.f32 %v919, %v99
    %v970 = vmax.f32 %v922, %v100
    %v971 = vmax.f32 %v927, %v101
    %v972 = vmax.f32 %v930, %v102
    %v973 = vmax.f32 %v935, %v103
    %v974 = vmax.f32 %v938, %v104
    %v975 = vmax.f32 %v943, %v105
    %v976 = vmax.f32 %v946, %v106
    %v977 = vmax.f32 %v951, %v107
    %v978 = vmax.f32 %v954, %v108
    %v979 = vmax.f32 %v959, %v109
    %v980 = vmax.f32 %v962, %v110
    %v981 = vld [vmem:[%s5] sm:$0xf]
    %v982 = vpack.c.bf16 %v966, %v965
    %v983 = vpack.c.bf16 %v968, %v967
    %v984 = vpack.c.bf16 %v970, %v969
    %v985 = vpack.c.bf16 %v972, %v971
    %v986 = vpack.c.bf16 %v974, %v973
    %v987 = vpack.c.bf16 %v976, %v975
    %v988 = vpack.c.bf16 %v978, %v977
    %v989 = vpack.c.bf16 %v980, %v979
    %v990 = vld [vmem:[#allocation2] sm:$0x1]
    %v992 = vlaneseq
    %v993 = vshrl.u32 %v992, 7
    %v994 = vsub.s32 0, %v993
    %v995 = vrot.slane %v990, %v994
    %996 = vset.pattern.permute.xlu0 0
    %997 = vperm.xlu0 %996, %v995
    %v998 = vpop.permute.xlu0 %997
    %1000 = vmatprep.subr.bf16.mxu0 0
    %1001 = vmatpush1.bf16.msra.mxu0 %v982
    %1002 = vmatprep.subr.bf16.mxu0 0
    %1003 = vmatpush1.bf16.msra.mxu0 %v983
    %1004 = vmatprep.subr.bf16.mxu0 0
    %1005 = vmatpush1.bf16.msra.mxu0 %v984
    %1006 = vmatprep.subr.bf16.mxu0 0
    %1007 = vmatpush1.bf16.msra.mxu0 %v985
    %1008 = vmatprep.subr.bf16.mxu0 0
    %1009 = vmatpush1.bf16.msra.mxu0 %v986
    %1010 = vmatprep.subr.bf16.mxu0 0
    %1011 = vmatpush1.bf16.msra.mxu0 %v987
    %1012 = vmatprep.subr.bf16.mxu0 0
    %1013 = vmatpush1.bf16.msra.mxu0 %v988
    %1014 = vmatprep.subr.bf16.mxu0 0
    %1015 = vmatpush1.bf16.msra.mxu0 %v989
    %1016 = vmatprep.subr.bf16.mxu0 0
    %1017 = vmatpush1.bf16.msra.mxu0 0
    %1018 = vmatprep.subr.bf16.mxu0 0
    %1019 = vmatpush1.bf16.msra.mxu0 0
    %1020 = vmatprep.subr.bf16.mxu0 0
    %1021 = vmatpush1.bf16.msra.mxu0 0
    %1022 = vmatprep.subr.bf16.mxu0 0
    %1023 = vmatpush1.bf16.msra.mxu0 0
    %1024 = vmatprep.subr.bf16.mxu0 0
    %1025 = vmatpush1.bf16.msra.mxu0 0
    %1026 = vmatprep.subr.bf16.mxu0 0
    %1027 = vmatpush1.bf16.msra.mxu0 0
    %1028 = vmatprep.subr.bf16.mxu0 0
    %1029 = vmatpush1.bf16.msra.mxu0 0
    %1030 = vmatprep.subr.bf16.mxu0 0
    %1031 = vmatpush1.bf16.msra.mxu0 0
    %1032 = vmatprep.mubr.bf16.mxu0 0
    %1033 = vmatmul.mubr.bf16.gmra.mrb[0].mxu0 %v981
    %v1034 = vpop.f32.mrb[0].mxu0
    %v1035 = vadd.f32 %v998, %v1034
    %v1036 = vpop.f32.mrb[0].mxu0
    %v1037 = vpop.f32.mrb[0].mxu0
    %v1038 = vpop.f32.mrb[0].mxu0
    %1039 = vdwg.mxu0
    %1040 = vst [vmem:[#allocation3] sm:$0xff] %v1035
    // Predicated region
    $region30: #{tpu_custom_call.1} parent=1 // pred_check
      _
    $region31: #{tpu_custom_call.1} parent=1 // pred_check_branch
      %1042 = sbr.rel (0) target = $region33
    $region32: #{tpu_custom_call.1} parent=1 // pred_region
      %s1044 = ssub.s32 128, 128
      %1045 = vsyncadd [#allocation4], %s1044
      %s1047 = sshll.u32 [#allocation3], 4
      %s1048 = int_to_ptr.vmem [resolvable:$true] %s1047
      %1050 = dma.vmem_to_hbm [thread:$0]  %s1048, 128, %s7, [#allocation4]
    $region33: #{tpu_custom_call.1} parent=1 // pred_fallthru
      _
    // Predicated region
    $region34: #{tpu_custom_call.1} parent=1 // pred_check
      _
    $region35: #{tpu_custom_call.1} parent=1 // pred_check_branch
      %1052 = sbr.rel (0) target = $region37
    $region36: #{tpu_custom_call.1} parent=1 // pred_region
      %1053 = dma.done [#allocation4], 128
    $region37: #{tpu_custom_call.1} parent=1 // pred_fallthru
      _
    %1054 = vsyncpa [#allocation4], 1

</llo_original>
